<compile_context>
chip_gen: v5e
topology: v5e:2x2
jax: 0.10.0
libtpu: 0.0.40
codegen_flags: <defaults>
</compile_context>

<pallas_src>
import functools

import jax
import jax.numpy as jnp
from jax import lax
from jax.experimental import pallas as pl
from jax.experimental.pallas import tpu as pltpu

TEMPERATURE = 0.07
EPS = 1e-12
NEG_INF = -1e30          # finite "minus infinity" for masking before exp
LANE = 128               # TPU lane width
TEXT_TILE = 128          # text-row tile: MXU-row aligned, lane-dense loss rows


def _round_up(x, m):
    return (x + m - 1) // m * m


def _pad2d(x, rows, cols):
    r, c = x.shape
    return jnp.pad(x, ((0, rows - r), (0, cols - c)))


# ---------------------------------------------------------------------------
# Fused kernel: projection + L2 norm (both modalities) + full-table InfoNCE
# ---------------------------------------------------------------------------
def _tablecl_kernel(text_pooled_ref,              # (tq, Hx)  bf16, streamed
                    wx_ref, bx_ref,               # (Hx, Up) bf16 / (1, Up) f32
                    table_pooled_ref,             # (Kp, Ht)  bf16, resident
                    wt_ref, bt_ref,               # (Ht, Up) bf16 / (1, Up) f32
                    labels_ref,                   # (1, 1, tq) int32
                    loss_ref,                     # (1, 1, tq) f32
                    *, text_b, table_b, inv_temp, mask_rows):
    tq = text_pooled_ref.shape[0]
    kp = table_pooled_ref.shape[0]
    qi = pl.program_id(0)

    # ---- text tile: projection + L2 norm (bf16 MXU operands, f32 math) ----
    xe = jnp.dot(text_pooled_ref[...], wx_ref[...],
                 preferred_element_type=jnp.float32) + bx_ref[...]
    xn = (xe * lax.rsqrt(jnp.sum(xe * xe, axis=-1, keepdims=True) + EPS)
          ).astype(jnp.bfloat16)                                     # (tq, Up)

    # ---- full table: projection + L2 norm (recomputed per text tile) ------
    te = jnp.dot(table_pooled_ref[...], wt_ref[...],
                 preferred_element_type=jnp.float32) + bt_ref[...]
    tn = (te * lax.rsqrt(jnp.sum(te * te, axis=-1, keepdims=True) + EPS)
          ).astype(jnp.bfloat16)                                     # (kp, Up)

    # ---- similarity: table rows on sublanes, text rows on lanes -----------
    # 1/temperature applied here in f32 (not folded into bf16 embeddings).
    s = lax.dot_general(tn, xn, (((1,), (1,)), ((), ())),
                        preferred_element_type=jnp.float32) * inv_temp  # (kp, tq)

    tbl_ids = lax.broadcasted_iota(jnp.int32, (kp, 1), 0)
    if kp > table_b:                     # static: skip when no padded rows
        s = jnp.where(tbl_ids < table_b, s, NEG_INF)

    # ---- full-table softmax cross-entropy per text row ---------------------
    m = jnp.max(s, axis=0, keepdims=True)                            # (1, tq)
    lse = m + jnp.log(jnp.sum(jnp.exp(s - m), axis=0, keepdims=True))

    lab = labels_ref[0]                                              # (1, tq)
    pos = jnp.sum(jnp.where(tbl_ids == lab, s, 0.0),
                  axis=0, keepdims=True)                             # (1, tq)

    per_row = lse - pos                                              # (1, tq)
    if mask_rows:                        # static: skip when batch is aligned
        row_ids = qi * tq + lax.broadcasted_iota(jnp.int32, (1, tq), 1)
        per_row = jnp.where(row_ids < text_b, per_row, 0.0)

    loss_ref[0] = per_row


# ---------------------------------------------------------------------------
# TableCL forward (downstream of the HF encoders)
# ---------------------------------------------------------------------------
def tablecl_forward(table_pooled, text_pooled,
                    w_table, b_table, w_text, b_text, labels,
                    *, text_tile=TEXT_TILE):
    """InfoNCE loss of TableCL given pooled encoder outputs.

    table_pooled: [table_b, table_hidden]   (encoder pooler_output)
    text_pooled:  [text_b, text_hidden]     (encoder CLS of last_hidden_state)
    w_table:      [table_hidden, uni_dim]   (Linear weight, already transposed)
    b_table:      [uni_dim]
    w_text:       [text_hidden, uni_dim]
    b_text:       [uni_dim]
    labels:       [text_b] int32, index of the positive table for each text
    """
    text_b, text_h = text_pooled.shape
    table_b, table_h = table_pooled.shape
    uni = w_text.shape[1]

    up = _round_up(uni, LANE)
    hx = _round_up(text_h, LANE)
    ht = _round_up(table_h, LANE)
    tq = text_tile                         # keep Qp//tq >= 2 when the text
    qp = _round_up(text_b, tq)             # batch allows it (v7x megacore)
    nq = qp // tq
    kp = _round_up(table_b, 16)            # bf16 sublane pack; minimal exp waste

    # Zero padding is numerically safe: padded hidden cols / W rows / uni cols
    # (W cols + bias) contribute 0 to the projection, norm and dots; padded
    # table rows are masked to -inf and padded text rows are zeroed in-kernel.
    text_p = _pad2d(text_pooled, qp, hx).astype(jnp.bfloat16)
    table_p = _pad2d(table_pooled, kp, ht).astype(jnp.bfloat16)
    wx_p = _pad2d(w_text, hx, up).astype(jnp.bfloat16)
    wt_p = _pad2d(w_table, ht, up).astype(jnp.bfloat16)
    bx_p = _pad2d(b_text.reshape(1, -1).astype(jnp.float32), 1, up)
    bt_p = _pad2d(b_table.reshape(1, -1).astype(jnp.float32), 1, up)
    labels_p = jnp.pad(labels.astype(jnp.int32),
                       (0, qp - text_b)).reshape(nq, 1, tq)

    per_row = pl.pallas_call(
        functools.partial(_tablecl_kernel,
                          text_b=text_b, table_b=table_b,
                          inv_temp=1.0 / TEMPERATURE,
                          mask_rows=(qp != text_b)),
        out_shape=jax.ShapeDtypeStruct((nq, 1, tq), jnp.float32),
        grid_spec=pltpu.PrefetchScalarGridSpec(
            num_scalar_prefetch=0,
            grid=(nq,),
            in_specs=[
                pl.BlockSpec((tq, hx), lambda i: (i, 0)),      # streamed text tile
                pl.BlockSpec((hx, up), lambda i: (0, 0)),      # resident text proj W
                pl.BlockSpec((1, up), lambda i: (0, 0)),       # resident text bias
                pl.BlockSpec((kp, ht), lambda i: (0, 0)),      # resident full table
                pl.BlockSpec((ht, up), lambda i: (0, 0)),      # resident table proj W
                pl.BlockSpec((1, up), lambda i: (0, 0)),       # resident table bias
                pl.BlockSpec((1, 1, tq), lambda i: (i, 0, 0)), # lane-dense labels
            ],
            out_specs=pl.BlockSpec((1, 1, tq), lambda i: (i, 0, 0)),  # lane-dense loss
        ),
        compiler_params=pltpu.CompilerParams(
            dimension_semantics=("parallel",),
            # Explicit budget (review, v7x 64 MiB physical / 32 MiB scoped):
            # resident W/bias/table + double-buffered text tile stay well
            # under 8 MiB even at H=1024, U=256, tq=256, table_b=1024.
            vmem_limit_bytes=32 * 1024 * 1024,
        ),
    )(text_p, wx_p, bx_p, table_p, wt_p, bt_p, labels_p)

    return jnp.sum(per_row) / text_b


if __name__ == "__main__":
    # Small, deliberately non-aligned shapes to exercise padding + masking.
    table_batch = 48
    text_batch = 40
    table_hidden = 96
    text_hidden = 80
    uni_dim = 64

    key = jax.random.PRNGKey(0)
    k1, k2, k3, k4, k5, k6, k7 = jax.random.split(key, 7)

    # Synthetic pooled encoder outputs (stand-ins for the transformer encoders).
    table_pooled = jax.random.normal(k1, (table_batch, table_hidden), jnp.float32)
    text_pooled = jax.random.normal(k2, (text_batch, text_hidden), jnp.float32)

    # Deterministic Linear params (PyTorch-style uniform(-1/sqrt(fan_in), +)).
    lim_t = 1.0 / jnp.sqrt(table_hidden)
    lim_x = 1.0 / jnp.sqrt(text_hidden)
    w_table = jax.random.uniform(k3, (table_hidden, uni_dim), jnp.float32, -lim_t, lim_t)
    b_table = jax.random.uniform(k4, (uni_dim,), jnp.float32, -lim_t, lim_t)
    w_text = jax.random.uniform(k5, (text_hidden, uni_dim), jnp.float32, -lim_x, lim_x)
    b_text = jax.random.uniform(k6, (uni_dim,), jnp.float32, -lim_x, lim_x)

    labels = jax.random.randint(k7, (text_batch,), 0, table_batch, jnp.int32)

    loss = tablecl_forward(table_pooled, text_pooled,
                           w_table, b_table, w_text, b_text, labels)
    jax.block_until_ready(loss)

    # Pure-JAX reference mirroring the kernel's mixed precision
    # (bf16 MXU operands, f32 accumulation / elementwise math, f32 1/T scale).
    def ref(tp, xp, wt, bt, wx, bx, lab):
        def proj_norm(p, w, b):
            e = jnp.dot(p.astype(jnp.bfloat16), w.astype(jnp.bfloat16),
                        preferred_element_type=jnp.float32) + b
            inv = lax.rsqrt(jnp.sum(e * e, axis=-1, keepdims=True) + EPS)
            return (e * inv).astype(jnp.bfloat16)

        te = proj_norm(tp, wt, bt)
        xe = proj_norm(xp, wx, bx)
        logits = jnp.dot(xe, te.T, preferred_element_type=jnp.float32) / TEMPERATURE
        m = jnp.max(logits, axis=-1, keepdims=True)
        lse = (m + jnp.log(jnp.sum(jnp.exp(logits - m), axis=-1,
                                   keepdims=True)))[:, 0]
        pos = jnp.take_along_axis(logits, lab[:, None], axis=-1)[:, 0]
        return jnp.mean(lse - pos)

    expected = ref(table_pooled, text_pooled, w_table, b_table,
                   w_text, b_text, labels)
    assert jnp.allclose(loss, expected, rtol=1e-2, atol=1e-2), (loss, expected)

    print("KERNEL_OK")
</pallas_src>

<mosaic_0001>
module attributes {stable_mosaic.version = 11 : i64} {
  func.func @_tablecl_kernel(%arg0: i32, %arg1: memref<128x128xbf16, #tpu.memory_space<vmem>>, %arg2: memref<128x128xbf16, #tpu.memory_space<vmem>>, %arg3: memref<1x128xf32, #tpu.memory_space<vmem>>, %arg4: memref<48x128xbf16, #tpu.memory_space<vmem>>, %arg5: memref<128x128xbf16, #tpu.memory_space<vmem>>, %arg6: memref<1x128xf32, #tpu.memory_space<vmem>>, %arg7: memref<1x1x128xi32, #tpu.memory_space<vmem>>, %arg8: memref<1x1x128xf32, #tpu.memory_space<vmem>>) attributes {dimension_semantics = [#tpu.dimension_semantics<parallel>], iteration_bounds = array<i64: 1>, scalar_prefetch = 0 : i64, scratch_operands = 0 : i64, tpu.core_type = #tpu.core_type<tc>, window_params = [{transform_indices = @transform_0, window_bounds = array<i64: 128, 128>}, {pipeline_mode = #tpu.pipeline_mode<synchronous>, transform_indices = @transform_1, window_bounds = array<i64: 128, 128>}, {pipeline_mode = #tpu.pipeline_mode<synchronous>, transform_indices = @transform_2, window_bounds = array<i64: 1, 128>}, {pipeline_mode = #tpu.pipeline_mode<synchronous>, transform_indices = @transform_3, window_bounds = array<i64: 48, 128>}, {pipeline_mode = #tpu.pipeline_mode<synchronous>, transform_indices = @transform_4, window_bounds = array<i64: 128, 128>}, {pipeline_mode = #tpu.pipeline_mode<synchronous>, transform_indices = @transform_5, window_bounds = array<i64: 1, 128>}, {transform_indices = @transform_6, window_bounds = array<i64: 1, 1, 128>}, {transform_indices = @transform_7, window_bounds = array<i64: 1, 1, 128>}]} {
    %c0 = arith.constant 0 : index
    %c0_0 = arith.constant 0 : index
    %0 = vector.load %arg1[%c0, %c0_0] : memref<128x128xbf16, #tpu.memory_space<vmem>>, vector<128x128xbf16>
    %c0_1 = arith.constant 0 : index
    %c0_2 = arith.constant 0 : index
    %1 = vector.load %arg2[%c0_1, %c0_2] : memref<128x128xbf16, #tpu.memory_space<vmem>>, vector<128x128xbf16>
    %cst = arith.constant dense<0.000000e+00> : vector<128x128xf32>
    %2 = tpu.matmul %0, %1, %cst {dimension_numbers = #tpu.dot_dimension_numbers<[1], [0], [0], [1], [0, 0, 1, 1], [], []>} : vector<128x128xbf16>, vector<128x128xbf16>, vector<128x128xf32> -> vector<128x128xf32>
    %c0_3 = arith.constant 0 : index
    %c0_4 = arith.constant 0 : index
    %3 = vector.load %arg3[%c0_3, %c0_4] : memref<1x128xf32, #tpu.memory_space<vmem>>, vector<1x128xf32>
    %4 = vector.broadcast %3 : vector<1x128xf32> to vector<128x128xf32>
    %5 = arith.addf %2, %4 : vector<128x128xf32>
    %6 = arith.mulf %5, %5 : vector<128x128xf32>
    %cst_5 = arith.constant dense<0.000000e+00> : vector<128xf32>
    %7 = vector.multi_reduction <add>, %6, %cst_5 [1] : vector<128x128xf32> to vector<128xf32>
    %8 = vector.shape_cast %7 : vector<128xf32> to vector<128x1xf32>
    %cst_6 = arith.constant 9.99999996E-13 : f32
    %9 = vector.broadcast %cst_6 : f32 to vector<128x1xf32>
    %10 = arith.addf %8, %9 : vector<128x1xf32>
    %11 = math.rsqrt %10 : vector<128x1xf32>
    %12 = vector.broadcast %11 : vector<128x1xf32> to vector<128x128xf32>
    %13 = arith.mulf %5, %12 : vector<128x128xf32>
    %14 = arith.truncf %13 : vector<128x128xf32> to vector<128x128xbf16>
    %c0_7 = arith.constant 0 : index
    %c0_8 = arith.constant 0 : index
    %15 = vector.load %arg4[%c0_7, %c0_8] : memref<48x128xbf16, #tpu.memory_space<vmem>>, vector<48x128xbf16>
    %c0_9 = arith.constant 0 : index
    %c0_10 = arith.constant 0 : index
    %16 = vector.load %arg5[%c0_9, %c0_10] : memref<128x128xbf16, #tpu.memory_space<vmem>>, vector<128x128xbf16>
    %cst_11 = arith.constant dense<0.000000e+00> : vector<48x128xf32>
    %17 = tpu.matmul %15, %16, %cst_11 {dimension_numbers = #tpu.dot_dimension_numbers<[1], [0], [0], [1], [0, 0, 1, 1], [], []>} : vector<48x128xbf16>, vector<128x128xbf16>, vector<48x128xf32> -> vector<48x128xf32>
    %c0_12 = arith.constant 0 : index
    %c0_13 = arith.constant 0 : index
    %18 = vector.load %arg6[%c0_12, %c0_13] : memref<1x128xf32, #tpu.memory_space<vmem>>, vector<1x128xf32>
    %19 = vector.broadcast %18 : vector<1x128xf32> to vector<48x128xf32>
    %20 = arith.addf %17, %19 : vector<48x128xf32>
    %21 = arith.mulf %20, %20 : vector<48x128xf32>
    %cst_14 = arith.constant dense<0.000000e+00> : vector<48xf32>
    %22 = vector.multi_reduction <add>, %21, %cst_14 [1] : vector<48x128xf32> to vector<48xf32>
    %23 = vector.shape_cast %22 : vector<48xf32> to vector<48x1xf32>
    %cst_15 = arith.constant 9.99999996E-13 : f32
    %24 = vector.broadcast %cst_15 : f32 to vector<48x1xf32>
    %25 = arith.addf %23, %24 : vector<48x1xf32>
    %26 = math.rsqrt %25 : vector<48x1xf32>
    %27 = vector.broadcast %26 : vector<48x1xf32> to vector<48x128xf32>
    %28 = arith.mulf %20, %27 : vector<48x128xf32>
    %29 = arith.truncf %28 : vector<48x128xf32> to vector<48x128xbf16>
    %cst_16 = arith.constant dense<0.000000e+00> : vector<48x128xf32>
    %30 = tpu.matmul %29, %14, %cst_16 {dimension_numbers = #tpu.dot_dimension_numbers<[1], [1], [0], [0], [0, 0, 1, 0], [], []>} : vector<48x128xbf16>, vector<128x128xbf16>, vector<48x128xf32> -> vector<48x128xf32>
    %cst_17 = arith.constant 14.2857141 : f32
    %31 = vector.broadcast %cst_17 : f32 to vector<48x128xf32>
    %32 = arith.mulf %30, %31 : vector<48x128xf32>
    %33 = tpu.iota {dimensions = array<i32: 0>} : vector<48x1xi32>
    %cst_18 = arith.constant dense<0xFF800000> : vector<128xf32>
    %34 = vector.multi_reduction <maximumf>, %32, %cst_18 [0] : vector<48x128xf32> to vector<128xf32>
    %35 = vector.shape_cast %34 : vector<128xf32> to vector<1x128xf32>
    %36 = vector.broadcast %35 : vector<1x128xf32> to vector<48x128xf32>
    %37 = arith.subf %32, %36 : vector<48x128xf32>
    %38 = math.exp %37 : vector<48x128xf32>
    %cst_19 = arith.constant dense<0.000000e+00> : vector<128xf32>
    %39 = vector.multi_reduction <add>, %38, %cst_19 [0] : vector<48x128xf32> to vector<128xf32>
    %40 = vector.shape_cast %39 : vector<128xf32> to vector<1x128xf32>
    %41 = math.log %40 : vector<1x128xf32>
    %42 = arith.addf %35, %41 : vector<1x128xf32>
    %c0_20 = arith.constant 0 : index
    %c0_21 = arith.constant 0 : index
    %c0_22 = arith.constant 0 : index
    %43 = vector.load %arg7[%c0_20, %c0_21, %c0_22] : memref<1x1x128xi32, #tpu.memory_space<vmem>>, vector<1x1x128xi32>
    %44 = vector.shape_cast %43 : vector<1x1x128xi32> to vector<1x128xi32>
    %45 = vector.broadcast %33 : vector<48x1xi32> to vector<48x128xi32>
    %46 = vector.broadcast %44 : vector<1x128xi32> to vector<48x128xi32>
    %47 = arith.cmpi eq, %45, %46 : vector<48x128xi32>
    %cst_23 = arith.constant 0.000000e+00 : f32
    %48 = vector.broadcast %cst_23 : f32 to vector<48x128xf32>
    %49 = arith.select %47, %32, %48 : vector<48x128xi1>, vector<48x128xf32>
    %cst_24 = arith.constant dense<0.000000e+00> : vector<128xf32>
    %50 = vector.multi_reduction <add>, %49, %cst_24 [0] : vector<48x128xf32> to vector<128xf32>
    %51 = vector.shape_cast %50 : vector<128xf32> to vector<1x128xf32>
    %52 = arith.subf %42, %51 : vector<1x128xf32>
    %c128_i32 = arith.constant 128 : i32
    %53 = arith.muli %arg0, %c128_i32 : i32
    %54 = tpu.iota {dimensions = array<i32: 1>} : vector<1x128xi32>
    %55 = vector.broadcast %53 : i32 to vector<1x128xi32>
    %56 = arith.addi %55, %54 : vector<1x128xi32>
    %c40_i32 = arith.constant 40 : i32
    %57 = vector.broadcast %c40_i32 : i32 to vector<1x128xi32>
    %58 = arith.cmpi slt, %56, %57 : vector<1x128xi32>
    %cst_25 = arith.constant 0.000000e+00 : f32
    %59 = vector.broadcast %cst_25 : f32 to vector<1x128xf32>
    %60 = arith.select %58, %52, %59 : vector<1x128xi1>, vector<1x128xf32>
    %c0_26 = arith.constant 0 : index
    %c0_27 = arith.constant 0 : index
    %c0_28 = arith.constant 0 : index
    %61 = vector.load %arg8[%c0_26, %c0_27, %c0_28] : memref<1x1x128xf32, #tpu.memory_space<vmem>>, vector<1x1x128xf32>
    %62 = vector.shape_cast %61 : vector<1x1x128xf32> to vector<1x128xf32>
    %63 = vector.shape_cast %60 : vector<1x128xf32> to vector<1x1x128xf32>
    tpu.vector_store %arg8[%c0_26, %c0_27, %c0_28], %63 {strides = array<i32>} : memref<1x1x128xf32, #tpu.memory_space<vmem>>, vector<1x1x128xf32>,
    return
  }
  func.func @transform_0(%arg0: i32) -> (i32, i32) {
    %c0_i32 = arith.constant 0 : i32
    %c0_i32_0 = arith.constant 0 : i32
    return %arg0, %c0_i32 : i32, i32
  }
  func.func @transform_1(%arg0: i32) -> (i32, i32) {
    %c0_i32 = arith.constant 0 : i32
    %c0_i32_0 = arith.constant 0 : i32
    %c0_i32_1 = arith.constant 0 : i32
    return %c0_i32, %c0_i32_0 : i32, i32
  }
  func.func @transform_2(%arg0: i32) -> (i32, i32) {
    %c0_i32 = arith.constant 0 : i32
    %c0_i32_0 = arith.constant 0 : i32
    %c0_i32_1 = arith.constant 0 : i32
    return %c0_i32, %c0_i32_0 : i32, i32
  }
  func.func @transform_3(%arg0: i32) -> (i32, i32) {
    %c0_i32 = arith.constant 0 : i32
    %c0_i32_0 = arith.constant 0 : i32
    %c0_i32_1 = arith.constant 0 : i32
    return %c0_i32, %c0_i32_0 : i32, i32
  }
  func.func @transform_4(%arg0: i32) -> (i32, i32) {
    %c0_i32 = arith.constant 0 : i32
    %c0_i32_0 = arith.constant 0 : i32
    %c0_i32_1 = arith.constant 0 : i32
    return %c0_i32, %c0_i32_0 : i32, i32
  }
  func.func @transform_5(%arg0: i32) -> (i32, i32) {
    %c0_i32 = arith.constant 0 : i32
    %c0_i32_0 = arith.constant 0 : i32
    %c0_i32_1 = arith.constant 0 : i32
    return %c0_i32, %c0_i32_0 : i32, i32
  }
  func.func @transform_6(%arg0: i32) -> (i32, i32, i32) {
    %c0_i32 = arith.constant 0 : i32
    %c0_i32_0 = arith.constant 0 : i32
    %c0_i32_1 = arith.constant 0 : i32
    return %arg0, %c0_i32, %c0_i32_0 : i32, i32, i32
  }
  func.func @transform_7(%arg0: i32) -> (i32, i32, i32) {
    %c0_i32 = arith.constant 0 : i32
    %c0_i32_0 = arith.constant 0 : i32
    %c0_i32_1 = arith.constant 0 : i32
    return %arg0, %c0_i32, %c0_i32_0 : i32, i32, i32
  }
}

</mosaic_0001>

<llo_original>
// kernel: tpu_custom_call.1
$region0: #{tpu_custom_call.1}
  #allocation0 [shape = 'u32[]', space=smem, size = 0x4, offset = 0x4, fixed_abs, tag = 'smem constant byte address 0x4 - core index']
  #allocation1 [shape = 'u32[72,128]{1,0:T(1,128)}', space=vmem, size = 0x9000, scoped, tag = 'internal scratch']
  %s0 = inlined_call_operand.hbm [shape: bf16[128,128], index: 0, kind: input, shape index: {}]
  %s1 = inlined_call_operand.hbm [shape: bf16[128,128], index: 1, kind: input, shape index: {}]
  %s2 = inlined_call_operand.vmem [shape: f32[1,128], index: 2, kind: input, shape index: {}]
  %s3 = inlined_call_operand.hbm [shape: bf16[48,128], index: 3, kind: input, shape index: {}]
  %s4 = inlined_call_operand.hbm [shape: bf16[128,128], index: 4, kind: input, shape index: {}]
  %s5 = inlined_call_operand.vmem [shape: f32[1,128], index: 5, kind: input, shape index: {}]
  %s6 = inlined_call_operand.vmem [shape: s32[1,1,128], index: 6, kind: input, shape index: {}]
  %s7 = inlined_call_operand.hbm [shape: f32[1,1,128], index: 7, kind: output, shape index: {}]
  %s8 = sld [smem:[#allocation0]]
  $region54: #{tpu_custom_call.1} parent=0
    _
  %s10 = ssub.s32 1, %s8
  %s11 = scalar_select 0, %s10, %s8
  $region1: #{tpu_custom_call.1} parent=0
    #allocation2 [shape = 'u8[32768]{0}', space=vmem, size = 0x8000, scoped, tag = 'input window, operand 0, single buffered']
    #allocation3 [shape = 's32[1]{0}', space=sflag, size = 0x4, scoped, tag = 'scoped memory for tpu_custom_call.1']
    #allocation4 [shape = 's32[1]{0}', space=sflag, size = 0x4, scoped, tag = 'scoped memory for tpu_custom_call.1']
    #allocation5 [shape = 'u8[32768]{0}', space=vmem, size = 0x8000, scoped, tag = 'input window, operand 1, single buffered']
    #allocation6 [shape = 's32[1]{0}', space=sflag, size = 0x4, scoped, tag = 'scoped memory for tpu_custom_call.1']
    #allocation7 [shape = 'u8[12288]{0}', space=vmem, size = 0x3000, scoped, tag = 'input window, operand 3, single buffered']
    #allocation8 [shape = 'u8[32768]{0}', space=vmem, size = 0x8000, scoped, tag = 'input window, operand 4, single buffered']
    #allocation9 [shape = 's32[1]{0}', space=sflag, size = 0x4, scoped, tag = 'scoped memory for tpu_custom_call.1']
    #allocation10 [shape = 'u8[512]{0}', space=vmem, size = 0x400, scoped, tag = 'output window, operand 0, single buffered']
    %12 = vsyncpa [#allocation3], 0
    %13 = vsyncpa [#allocation6], 0
    %14 = vsyncpa [#allocation9], 0
    %15 = vsyncpa [#allocation4], 0
    // Predicated region
    $region2: #{tpu_custom_call.1} parent=1 // pred_check
      _
    $region3: #{tpu_custom_call.1} parent=1 // pred_check_branch
      %17 = sbr.rel (0) target = $region5
    $region4: #{tpu_custom_call.1} parent=1 // pred_region
      %19 = vsyncadd [#allocation3], 0
      %s20 = sshll.u32 %s0, 4
      %s21 = int_to_ptr.hbm [resolvable:$true] %s20
      %s22 = sshll.u32 [#allocation2], 4
      %s23 = int_to_ptr.vmem [resolvable:$true] %s22
      %28 = dma.hbm_to_vmem [thread:$0]  %s21, 1024, %s23, [#allocation3], 64, 64, 4
    $region5: #{tpu_custom_call.1} parent=1 // pred_fallthru
      _
    // Predicated region
    $region6: #{tpu_custom_call.1} parent=1 // pred_check
      _
    $region7: #{tpu_custom_call.1} parent=1 // pred_check_branch
      %30 = sbr.rel (0) target = $region9
    $region8: #{tpu_custom_call.1} parent=1 // pred_region
      %32 = vsyncadd [#allocation6], 0
      %s33 = sshll.u32 %s1, 4
      %s34 = int_to_ptr.hbm [resolvable:$true] %s33
      %s35 = sshll.u32 [#allocation5], 4
      %s36 = int_to_ptr.vmem [resolvable:$true] %s35
      %41 = dma.hbm_to_vmem [thread:$0]  %s34, 1024, %s36, [#allocation6], 64, 64, 4
    $region9: #{tpu_custom_call.1} parent=1 // pred_fallthru
      _
    // Predicated region
    $region10: #{tpu_custom_call.1} parent=1 // pred_check
      _
    $region11: #{tpu_custom_call.1} parent=1 // pred_check_branch
      %43 = sbr.rel (0) target = $region13
    $region12: #{tpu_custom_call.1} parent=1 // pred_region
      _
    $region13: #{tpu_custom_call.1} parent=1 // pred_fallthru
      _
    // Predicated region
    $region14: #{tpu_custom_call.1} parent=1 // pred_check
      _
    $region15: #{tpu_custom_call.1} parent=1 // pred_check_branch
      %45 = sbr.rel (0) target = $region17
    $region16: #{tpu_custom_call.1} parent=1 // pred_region
      %47 = vsyncadd [#allocation6], 0
      %s48 = sshll.u32 %s3, 4
      %s49 = int_to_ptr.hbm [resolvable:$true] %s48
      %s50 = sshll.u32 [#allocation7], 4
      %s51 = int_to_ptr.vmem [resolvable:$true] %s50
      %56 = dma.hbm_to_vmem [thread:$0]  %s49, 384, %s51, [#allocation6], 64, 64, 4
    $region17: #{tpu_custom_call.1} parent=1 // pred_fallthru
      _
    // Predicated region
    $region18: #{tpu_custom_call.1} parent=1 // pred_check
      _
    $region19: #{tpu_custom_call.1} parent=1 // pred_check_branch
      %58 = sbr.rel (0) target = $region21
    $region20: #{tpu_custom_call.1} parent=1 // pred_region
      %60 = vsyncadd [#allocation9], 0
      %s61 = sshll.u32 %s4, 4
      %s62 = int_to_ptr.hbm [resolvable:$true] %s61
      %s63 = sshll.u32 [#allocation8], 4
      %s64 = int_to_ptr.vmem [resolvable:$true] %s63
      %69 = dma.hbm_to_vmem [thread:$0]  %s62, 1024, %s64, [#allocation9], 64, 64, 4
    $region21: #{tpu_custom_call.1} parent=1 // pred_fallthru
      _
    // Predicated region
    $region22: #{tpu_custom_call.1} parent=1 // pred_check
      _
    $region23: #{tpu_custom_call.1} parent=1 // pred_check_branch
      %71 = sbr.rel (0) target = $region25
    $region24: #{tpu_custom_call.1} parent=1 // pred_region
      _
    $region25: #{tpu_custom_call.1} parent=1 // pred_fallthru
      _
    // Predicated region
    $region26: #{tpu_custom_call.1} parent=1 // pred_check
      _
    $region27: #{tpu_custom_call.1} parent=1 // pred_check_branch
      %73 = sbr.rel (0) target = $region29
    $region28: #{tpu_custom_call.1} parent=1 // pred_region
      _
    $region29: #{tpu_custom_call.1} parent=1 // pred_fallthru
      _
    // Predicated region
    $region30: #{tpu_custom_call.1} parent=1 // pred_check
      _
    $region31: #{tpu_custom_call.1} parent=1 // pred_check_branch
      %75 = sbr.rel (0) target = $region33
    $region32: #{tpu_custom_call.1} parent=1 // pred_region
      %77 = dma.done [#allocation3], 1024
    $region33: #{tpu_custom_call.1} parent=1 // pred_fallthru
      _
    // Predicated region
    $region34: #{tpu_custom_call.1} parent=1 // pred_check
      _
    $region35: #{tpu_custom_call.1} parent=1 // pred_check_branch
      %79 = sbr.rel (0) target = $region37
    $region36: #{tpu_custom_call.1} parent=1 // pred_region
      %81 = dma.done [#allocation6], 1024
    $region37: #{tpu_custom_call.1} parent=1 // pred_fallthru
      _
    // Predicated region
    $region38: #{tpu_custom_call.1} parent=1 // pred_check
      _
    $region39: #{tpu_custom_call.1} parent=1 // pred_check_branch
      %83 = sbr.rel (0) target = $region41
    $region40: #{tpu_custom_call.1} parent=1 // pred_region
      %85 = dma.done [#allocation6], 384
    $region41: #{tpu_custom_call.1} parent=1 // pred_fallthru
      _
    // Predicated region
    $region42: #{tpu_custom_call.1} parent=1 // pred_check
      _
    $region43: #{tpu_custom_call.1} parent=1 // pred_check_branch
      %87 = sbr.rel (0) target = $region45
    $region44: #{tpu_custom_call.1} parent=1 // pred_region
      %89 = dma.done [#allocation9], 1024
    $region45: #{tpu_custom_call.1} parent=1 // pred_fallthru
      _
    %v90 = vld [vmem:[#allocation2] sm:$0xf]
    %v91 = vld [vmem:[#allocation2 + $0x4] sm:$0xf]
    %v92 = vld [vmem:[#allocation2 + $0x8] sm:$0xf]
    %v93 = vld [vmem:[#allocation2 + $0xc] sm:$0xf]
    %v94 = vld [vmem:[#allocation2 + $0x10] sm:$0xf]
    %v95 = vld [vmem:[#allocation2 + $0x14] sm:$0xf]
    %v96 = vld [vmem:[#allocation2 + $0x18] sm:$0xf]
    %v97 = vld [vmem:[#allocation2 + $0x1c] sm:$0xf]
    %v98 = vld [vmem:[#allocation2 + $0x20] sm:$0xf]
    %v99 = vld [vmem:[#allocation2 + $0x24] sm:$0xf]
    %v100 = vld [vmem:[#allocation2 + $0x28] sm:$0xf]
    %v101 = vld [vmem:[#allocation2 + $0x2c] sm:$0xf]
    %v102 = vld [vmem:[#allocation2 + $0x30] sm:$0xf]
    %v103 = vld [vmem:[#allocation2 + $0x34] sm:$0xf]
    %v104 = vld [vmem:[#allocation2 + $0x38] sm:$0xf]
    %v105 = vld [vmem:[#allocation2 + $0x3c] sm:$0xf]
    %v106 = vld [vmem:[#allocation5] sm:$0xf]
    %v107 = vld [vmem:[#allocation5 + $0x4] sm:$0xf]
    %v108 = vld [vmem:[#allocation5 + $0x8] sm:$0xf]
    %v109 = vld [vmem:[#allocation5 + $0xc] sm:$0xf]
    %v110 = vld [vmem:[#allocation5 + $0x10] sm:$0xf]
    %v111 = vld [vmem:[#allocation5 + $0x14] sm:$0xf]
    %v112 = vld [vmem:[#allocation5 + $0x18] sm:$0xf]
    %v113 = vld [vmem:[#allocation5 + $0x1c] sm:$0xf]
    %v114 = vld [vmem:[#allocation5 + $0x20] sm:$0xf]
    %v115 = vld [vmem:[#allocation5 + $0x24] sm:$0xf]
    %v116 = vld [vmem:[#allocation5 + $0x28] sm:$0xf]
    %v117 = vld [vmem:[#allocation5 + $0x2c] sm:$0xf]
    %v118 = vld [vmem:[#allocation5 + $0x30] sm:$0xf]
    %v119 = vld [vmem:[#allocation5 + $0x34] sm:$0xf]
    %v120 = vld [vmem:[#allocation5 + $0x38] sm:$0xf]
    %v121 = vld [vmem:[#allocation5 + $0x3c] sm:$0xf]
    %v122 = vld [vmem:[%s2] sm:$0x1]
    %v124 = vperm.slane %v122, 0
    %v142 = vunpack.c.l.b16 %v90
    %v143 = vunpack.c.l.b16 %v91
    %v144 = vunpack.c.l.b16 %v92
    %v145 = vunpack.c.l.b16 %v93
    %v146 = vunpack.c.l.b16 %v94
    %v147 = vunpack.c.l.b16 %v95
    %v148 = vunpack.c.l.b16 %v96
    %v149 = vunpack.c.l.b16 %v97
    %v150 = vunpack.c.l.b16 %v98
    %v151 = vunpack.c.l.b16 %v99
    %v152 = vunpack.c.l.b16 %v100
    %v153 = vunpack.c.l.b16 %v101
    %v154 = vunpack.c.l.b16 %v102
    %v155 = vunpack.c.l.b16 %v103
    %v156 = vunpack.c.l.b16 %v104
    %v157 = vunpack.c.l.b16 %v105
    %v158 = vpack.c.b16 %v143, %v142
    %v159 = vpack.c.b16 %v145, %v144
    %v160 = vpack.c.b16 %v147, %v146
    %v161 = vpack.c.b16 %v149, %v148
    %v162 = vpack.c.b16 %v151, %v150
    %v163 = vpack.c.b16 %v153, %v152
    %v164 = vpack.c.b16 %v155, %v154
    %v165 = vpack.c.b16 %v157, %v156
    %v190 = vunpack.c.l.b16 %v106
    %v191 = vunpack.c.l.b16 %v107
    %v192 = vunpack.c.l.b16 %v108
    %v193 = vunpack.c.l.b16 %v109
    %v194 = vunpack.c.l.b16 %v110
    %v195 = vunpack.c.l.b16 %v111
    %v196 = vunpack.c.l.b16 %v112
    %v197 = vunpack.c.l.b16 %v113
    %v198 = vunpack.c.l.b16 %v114
    %v199 = vunpack.c.l.b16 %v115
    %v200 = vunpack.c.l.b16 %v116
    %v201 = vunpack.c.l.b16 %v117
    %v202 = vunpack.c.l.b16 %v118
    %v203 = vunpack.c.l.b16 %v119
    %v204 = vunpack.c.l.b16 %v120
    %v205 = vunpack.c.l.b16 %v121
    %v206 = vpack.c.b16 %v191, %v190
    %v207 = vpack.c.b16 %v193, %v192
    %v208 = vpack.c.b16 %v195, %v194
    %v209 = vpack.c.b16 %v197, %v196
    %v210 = vpack.c.b16 %v199, %v198
    %v211 = vpack.c.b16 %v201, %v200
    %v212 = vpack.c.b16 %v203, %v202
    %v213 = vpack.c.b16 %v205, %v204
    %222 = vmatpush.bf16.msra.mxu0 %v213
    %223 = vmatpush.bf16.msra.mxu0 %v212
    %224 = vmatpush.bf16.msra.mxu0 %v211
    %225 = vmatpush.bf16.msra.mxu0 %v210
    %226 = vmatpush.bf16.msra.mxu0 %v209
    %227 = vmatpush.bf16.msra.mxu0 %v208
    %228 = vmatpush.bf16.msra.mxu0 %v207
    %229 = vmatpush.bf16.msra.mxu0 %v206
    %230 = vmatmul.bf16.gmra.mxu0 %v158
    %v231 = vpop.f32.mrf.mxu0
    %v232 = vadd.f32 %v124, %v231
    %v233 = vpop.f32.mrf.mxu0
    %v234 = vadd.f32 %v124, %v233
    %235 = vmatmul.bf16.gmra.mxu0 %v159
    %v236 = vpop.f32.mrf.mxu0
    %v237 = vadd.f32 %v124, %v236
    %v238 = vpop.f32.mrf.mxu0
    %v239 = vadd.f32 %v124, %v238
    %240 = vmatmul.bf16.gmra.mxu0 %v160
    %v241 = vpop.f32.mrf.mxu0
    %v242 = vadd.f32 %v124, %v241
    %v243 = vpop.f32.mrf.mxu0
    %v244 = vadd.f32 %v124, %v243
    %245 = vmatmul.bf16.gmra.mxu0 %v161
    %v246 = vpop.f32.mrf.mxu0
    %v247 = vadd.f32 %v124, %v246
    %v248 = vpop.f32.mrf.mxu0
    %v249 = vadd.f32 %v124, %v248
    %250 = vmatmul.bf16.gmra.mxu0 %v162
    %v251 = vpop.f32.mrf.mxu0
    %v252 = vadd.f32 %v124, %v251
    %v253 = vpop.f32.mrf.mxu0
    %v254 = vadd.f32 %v124, %v253
    %255 = vmatmul.bf16.gmra.mxu0 %v163
    %v256 = vpop.f32.mrf.mxu0
    %v257 = vadd.f32 %v124, %v256
    %v258 = vpop.f32.mrf.mxu0
    %v259 = vadd.f32 %v124, %v258
    %260 = vmatmul.bf16.gmra.mxu0 %v164
    %v261 = vpop.f32.mrf.mxu0
    %v262 = vadd.f32 %v124, %v261
    %v263 = vpop.f32.mrf.mxu0
    %v264 = vadd.f32 %v124, %v263
    %265 = vmatmul.bf16.gmra.mxu0 %v165
    %v266 = vpop.f32.mrf.mxu0
    %v267 = vadd.f32 %v124, %v266
    %v268 = vpop.f32.mrf.mxu0
    %v269 = vadd.f32 %v124, %v268
    %270 = vdwg.mxu0
    %v271 = vmul.f32 %v232, %v232
    %v272 = vmul.f32 %v234, %v234
    %v273 = vmul.f32 %v237, %v237
    %v274 = vmul.f32 %v239, %v239
    %v275 = vmul.f32 %v242, %v242
    %v276 = vmul.f32 %v244, %v244
    %v277 = vmul.f32 %v247, %v247
    %v278 = vmul.f32 %v249, %v249
    %v279 = vmul.f32 %v252, %v252
    %v280 = vmul.f32 %v254, %v254
    %v281 = vmul.f32 %v257, %v257
    %v282 = vmul.f32 %v259, %v259
    %v283 = vmul.f32 %v262, %v262
    %v284 = vmul.f32 %v264, %v264
    %v285 = vmul.f32 %v267, %v267
    %v286 = vmul.f32 %v269, %v269
    %287 = vadd.xlane.f32.xlu0 %v271
    %v288 = vpop.xlane.xlu0 %287
    %289 = vadd.xlane.f32.xlu0 %v272
    %v290 = vpop.xlane.xlu0 %289
    %291 = vadd.xlane.f32.xlu0 %v273
    %v292 = vpop.xlane.xlu0 %291
    %293 = vadd.xlane.f32.xlu0 %v274
    %v294 = vpop.xlane.xlu0 %293
    %295 = vadd.xlane.f32.xlu0 %v275
    %v296 = vpop.xlane.xlu0 %295
    %297 = vadd.xlane.f32.xlu0 %v276
    %v298 = vpop.xlane.xlu0 %297
    %299 = vadd.xlane.f32.xlu0 %v277
    %v300 = vpop.xlane.xlu0 %299
    %301 = vadd.xlane.f32.xlu0 %v278
    %v302 = vpop.xlane.xlu0 %301
    %303 = vadd.xlane.f32.xlu0 %v279
    %v304 = vpop.xlane.xlu0 %303
    %305 = vadd.xlane.f32.xlu0 %v280
    %v306 = vpop.xlane.xlu0 %305
    %307 = vadd.xlane.f32.xlu0 %v281
    %v308 = vpop.xlane.xlu0 %307
    %309 = vadd.xlane.f32.xlu0 %v282
    %v310 = vpop.xlane.xlu0 %309
    %311 = vadd.xlane.f32.xlu0 %v283
    %v312 = vpop.xlane.xlu0 %311
    %313 = vadd.xlane.f32.xlu0 %v284
    %v314 = vpop.xlane.xlu0 %313
    %315 = vadd.xlane.f32.xlu0 %v285
    %v316 = vpop.xlane.xlu0 %315
    %317 = vadd.xlane.f32.xlu0 %v286
    %v318 = vpop.xlane.xlu0 %317
    %v319 = vadd.f32 %v288, 1e-12
    %v320 = vadd.f32 %v290, 1e-12
    %v321 = vadd.f32 %v292, 1e-12
    %v322 = vadd.f32 %v294, 1e-12
    %v323 = vadd.f32 %v296, 1e-12
    %v324 = vadd.f32 %v298, 1e-12
    %v325 = vadd.f32 %v300, 1e-12
    %v326 = vadd.f32 %v302, 1e-12
    %v327 = vadd.f32 %v304, 1e-12
    %v328 = vadd.f32 %v306, 1e-12
    %v329 = vadd.f32 %v308, 1e-12
    %v330 = vadd.f32 %v310, 1e-12
    %v331 = vadd.f32 %v312, 1e-12
    %v332 = vadd.f32 %v314, 1e-12
    %v333 = vadd.f32 %v316, 1e-12
    %v334 = vadd.f32 %v318, 1e-12
    %v335 = vrsqrt.pop %v319
    %v336 = vmul.f32 %v335, %v319
    %v337 = vmul.f32 %v336, %v335
    %v338 = vmul.f32 0.5, %v337
    %v339 = vsub.f32 1.5, %v338
    %v340 = vmul.f32 %v335, %v339
    %vm341 = vweird.f32 %v319
    %vm342 = vweird.f32 %v335
    %vm343 = vmor %vm341, %vm342
    %v344 = vsel %vm343, %v335, %v340
    %v345 = vrsqrt.pop %v320
    %v346 = vmul.f32 %v345, %v320
    %v347 = vmul.f32 %v346, %v345
    %v348 = vmul.f32 0.5, %v347
    %v349 = vsub.f32 1.5, %v348
    %v350 = vmul.f32 %v345, %v349
    %vm351 = vweird.f32 %v320
    %vm352 = vweird.f32 %v345
    %vm353 = vmor %vm351, %vm352
    %v354 = vsel %vm353, %v345, %v350
    %v355 = vrsqrt.pop %v321
    %v356 = vmul.f32 %v355, %v321
    %v357 = vmul.f32 %v356, %v355
    %v358 = vmul.f32 0.5, %v357
    %v359 = vsub.f32 1.5, %v358
    %v360 = vmul.f32 %v355, %v359
    %vm361 = vweird.f32 %v321
    %vm362 = vweird.f32 %v355
    %vm363 = vmor %vm361, %vm362
    %v364 = vsel %vm363, %v355, %v360
    %v365 = vrsqrt.pop %v322
    %v366 = vmul.f32 %v365, %v322
    %v367 = vmul.f32 %v366, %v365
    %v368 = vmul.f32 0.5, %v367
    %v369 = vsub.f32 1.5, %v368
    %v370 = vmul.f32 %v365, %v369
    %vm371 = vweird.f32 %v322
    %vm372 = vweird.f32 %v365
    %vm373 = vmor %vm371, %vm372
    %v374 = vsel %vm373, %v365, %v370
    %v375 = vrsqrt.pop %v323
    %v376 = vmul.f32 %v375, %v323
    %v377 = vmul.f32 %v376, %v375
    %v378 = vmul.f32 0.5, %v377
    %v379 = vsub.f32 1.5, %v378
    %v380 = vmul.f32 %v375, %v379
    %vm381 = vweird.f32 %v323
    %vm382 = vweird.f32 %v375
    %vm383 = vmor %vm381, %vm382
    %v384 = vsel %vm383, %v375, %v380
    %v385 = vrsqrt.pop %v324
    %v386 = vmul.f32 %v385, %v324
    %v387 = vmul.f32 %v386, %v385
    %v388 = vmul.f32 0.5, %v387
    %v389 = vsub.f32 1.5, %v388
    %v390 = vmul.f32 %v385, %v389
    %vm391 = vweird.f32 %v324
    %vm392 = vweird.f32 %v385
    %vm393 = vmor %vm391, %vm392
    %v394 = vsel %vm393, %v385, %v390
    %v395 = vrsqrt.pop %v325
    %v396 = vmul.f32 %v395, %v325
    %v397 = vmul.f32 %v396, %v395
    %v398 = vmul.f32 0.5, %v397
    %v399 = vsub.f32 1.5, %v398
    %v400 = vmul.f32 %v395, %v399
    %vm401 = vweird.f32 %v325
    %vm402 = vweird.f32 %v395
    %vm403 = vmor %vm401, %vm402
    %v404 = vsel %vm403, %v395, %v400
    %v405 = vrsqrt.pop %v326
    %v406 = vmul.f32 %v405, %v326
    %v407 = vmul.f32 %v406, %v405
    %v408 = vmul.f32 0.5, %v407
    %v409 = vsub.f32 1.5, %v408
    %v410 = vmul.f32 %v405, %v409
    %vm411 = vweird.f32 %v326
    %vm412 = vweird.f32 %v405
    %vm413 = vmor %vm411, %vm412
    %v414 = vsel %vm413, %v405, %v410
    %v415 = vrsqrt.pop %v327
    %v416 = vmul.f32 %v415, %v327
    %v417 = vmul.f32 %v416, %v415
    %v418 = vmul.f32 0.5, %v417
    %v419 = vsub.f32 1.5, %v418
    %v420 = vmul.f32 %v415, %v419
    %vm421 = vweird.f32 %v327
    %vm422 = vweird.f32 %v415
    %vm423 = vmor %vm421, %vm422
    %v424 = vsel %vm423, %v415, %v420
    %v425 = vrsqrt.pop %v328
    %v426 = vmul.f32 %v425, %v328
    %v427 = vmul.f32 %v426, %v425
    %v428 = vmul.f32 0.5, %v427
    %v429 = vsub.f32 1.5, %v428
    %v430 = vmul.f32 %v425, %v429
    %vm431 = vweird.f32 %v328
    %vm432 = vweird.f32 %v425
    %vm433 = vmor %vm431, %vm432
    %v434 = vsel %vm433, %v425, %v430
    %v435 = vrsqrt.pop %v329
    %v436 = vmul.f32 %v435, %v329
    %v437 = vmul.f32 %v436, %v435
    %v438 = vmul.f32 0.5, %v437
    %v439 = vsub.f32 1.5, %v438
    %v440 = vmul.f32 %v435, %v439
    %vm441 = vweird.f32 %v329
    %vm442 = vweird.f32 %v435
    %vm443 = vmor %vm441, %vm442
    %v444 = vsel %vm443, %v435, %v440
    %v445 = vrsqrt.pop %v330
    %v446 = vmul.f32 %v445, %v330
    %v447 = vmul.f32 %v446, %v445
    %v448 = vmul.f32 0.5, %v447
    %v449 = vsub.f32 1.5, %v448
    %v450 = vmul.f32 %v445, %v449
    %vm451 = vweird.f32 %v330
    %vm452 = vweird.f32 %v445
    %vm453 = vmor %vm451, %vm452
    %v454 = vsel %vm453, %v445, %v450
    %v455 = vrsqrt.pop %v331
    %v456 = vmul.f32 %v455, %v331
    %v457 = vmul.f32 %v456, %v455
    %v458 = vmul.f32 0.5, %v457
    %v459 = vsub.f32 1.5, %v458
    %v460 = vmul.f32 %v455, %v459
    %vm461 = vweird.f32 %v331
    %vm462 = vweird.f32 %v455
    %vm463 = vmor %vm461, %vm462
    %v464 = vsel %vm463, %v455, %v460
    %v465 = vrsqrt.pop %v332
    %v466 = vmul.f32 %v465, %v332
    %v467 = vmul.f32 %v466, %v465
    %v468 = vmul.f32 0.5, %v467
    %v469 = vsub.f32 1.5, %v468
    %v470 = vmul.f32 %v465, %v469
    %vm471 = vweird.f32 %v332
    %vm472 = vweird.f32 %v465
    %vm473 = vmor %vm471, %vm472
    %v474 = vsel %vm473, %v465, %v470
    %v475 = vrsqrt.pop %v333
    %v476 = vmul.f32 %v475, %v333
    %v477 = vmul.f32 %v476, %v475
    %v478 = vmul.f32 0.5, %v477
    %v479 = vsub.f32 1.5, %v478
    %v480 = vmul.f32 %v475, %v479
    %vm481 = vweird.f32 %v333
    %vm482 = vweird.f32 %v475
    %vm483 = vmor %vm481, %vm482
    %v484 = vsel %vm483, %v475, %v480
    %v485 = vrsqrt.pop %v334
    %v486 = vmul.f32 %v485, %v334
    %v487 = vmul.f32 %v486, %v485
    %v488 = vmul.f32 0.5, %v487
    %v489 = vsub.f32 1.5, %v488
    %v490 = vmul.f32 %v485, %v489
    %vm491 = vweird.f32 %v334
    %vm492 = vweird.f32 %v485
    %vm493 = vmor %vm491, %vm492
    %v494 = vsel %vm493, %v485, %v490
    %v495 = vmul.f32 %v232, %v344
    %v496 = vmul.f32 %v234, %v354
    %v497 = vmul.f32 %v237, %v364
    %v498 = vmul.f32 %v239, %v374
    %v499 = vmul.f32 %v242, %v384
    %v500 = vmul.f32 %v244, %v394
    %v501 = vmul.f32 %v247, %v404
    %v502 = vmul.f32 %v249, %v414
    %v503 = vmul.f32 %v252, %v424
    %v504 = vmul.f32 %v254, %v434
    %v505 = vmul.f32 %v257, %v444
    %v506 = vmul.f32 %v259, %v454
    %v507 = vmul.f32 %v262, %v464
    %v508 = vmul.f32 %v264, %v474
    %v509 = vmul.f32 %v267, %v484
    %v510 = vmul.f32 %v269, %v494
    %v511 = vpack.c.bf16 %v496, %v495
    %v512 = vpack.c.bf16 %v498, %v497
    %v513 = vpack.c.bf16 %v500, %v499
    %v514 = vpack.c.bf16 %v502, %v501
    %v515 = vpack.c.bf16 %v504, %v503
    %v516 = vpack.c.bf16 %v506, %v505
    %v517 = vpack.c.bf16 %v508, %v507
    %v518 = vpack.c.bf16 %v510, %v509
    %v519 = vld [vmem:[#allocation7] sm:$0xf]
    %v520 = vld [vmem:[#allocation7 + $0x4] sm:$0xf]
    %v521 = vld [vmem:[#allocation7 + $0x8] sm:$0xf]
    %v522 = vld [vmem:[#allocation7 + $0xc] sm:$0xf]
    %v523 = vld [vmem:[#allocation7 + $0x10] sm:$0xf]
    %v524 = vld [vmem:[#allocation7 + $0x14] sm:$0xf]
    %v525 = vld [vmem:[#allocation8] sm:$0xf]
    %v526 = vld [vmem:[#allocation8 + $0x4] sm:$0xf]
    %v527 = vld [vmem:[#allocation8 + $0x8] sm:$0xf]
    %v528 = vld [vmem:[#allocation8 + $0xc] sm:$0xf]
    %v529 = vld [vmem:[#allocation8 + $0x10] sm:$0xf]
    %v530 = vld [vmem:[#allocation8 + $0x14] sm:$0xf]
    %v531 = vld [vmem:[#allocation8 + $0x18] sm:$0xf]
    %v532 = vld [vmem:[#allocation8 + $0x1c] sm:$0xf]
    %v533 = vld [vmem:[#allocation8 + $0x20] sm:$0xf]
    %v534 = vld [vmem:[#allocation8 + $0x24] sm:$0xf]
    %v535 = vld [vmem:[#allocation8 + $0x28] sm:$0xf]
    %v536 = vld [vmem:[#allocation8 + $0x2c] sm:$0xf]
    %v537 = vld [vmem:[#allocation8 + $0x30] sm:$0xf]
    %v538 = vld [vmem:[#allocation8 + $0x34] sm:$0xf]
    %v539 = vld [vmem:[#allocation8 + $0x38] sm:$0xf]
    %v540 = vld [vmem:[#allocation8 + $0x3c] sm:$0xf]
    %v541 = vld [vmem:[%s5] sm:$0x1]
    %v543 = vperm.slane %v541, 0
    %v551 = vunpack.c.l.b16 %v519
    %v552 = vunpack.c.l.b16 %v520
    %v553 = vunpack.c.l.b16 %v521
    %v554 = vunpack.c.l.b16 %v522
    %v555 = vunpack.c.l.b16 %v523
    %v556 = vunpack.c.l.b16 %v524
    %v557 = vpack.c.b16 %v552, %v551
    %v558 = vpack.c.b16 %v554, %v553
    %v559 = vpack.c.b16 %v556, %v555
    %v579 = vunpack.c.l.b16 %v525
    %v580 = vunpack.c.l.b16 %v526
    %v581 = vunpack.c.l.b16 %v527
    %v582 = vunpack.c.l.b16 %v528
    %v583 = vunpack.c.l.b16 %v529
    %v584 = vunpack.c.l.b16 %v530
    %v585 = vunpack.c.l.b16 %v531
    %v586 = vunpack.c.l.b16 %v532
    %v587 = vunpack.c.l.b16 %v533
    %v588 = vunpack.c.l.b16 %v534
    %v589 = vunpack.c.l.b16 %v535
    %v590 = vunpack.c.l.b16 %v536
    %v591 = vunpack.c.l.b16 %v537
    %v592 = vunpack.c.l.b16 %v538
    %v593 = vunpack.c.l.b16 %v539
    %v594 = vunpack.c.l.b16 %v540
    %v595 = vpack.c.b16 %v580, %v579
    %v596 = vpack.c.b16 %v582, %v581
    %v597 = vpack.c.b16 %v584, %v583
    %v598 = vpack.c.b16 %v586, %v585
    %v599 = vpack.c.b16 %v588, %v587
    %v600 = vpack.c.b16 %v590, %v589
    %v601 = vpack.c.b16 %v592, %v591
    %v602 = vpack.c.b16 %v594, %v593
    %611 = vmatpush.bf16.msra.mxu0 %v602
    %612 = vmatpush.bf16.msra.mxu0 %v601
    %613 = vmatpush.bf16.msra.mxu0 %v600
    %614 = vmatpush.bf16.msra.mxu0 %v599
    %615 = vmatpush.bf16.msra.mxu0 %v598
    %616 = vmatpush.bf16.msra.mxu0 %v597
    %617 = vmatpush.bf16.msra.mxu0 %v596
    %618 = vmatpush.bf16.msra.mxu0 %v595
    %619 = vmatmul.bf16.gmra.mxu0 %v557
    %v620 = vpop.f32.mrf.mxu0
    %v621 = vadd.f32 %v543, %v620
    %v622 = vpop.f32.mrf.mxu0
    %v623 = vadd.f32 %v543, %v622
    %624 = vmatmul.bf16.gmra.mxu0 %v558
    %v625 = vpop.f32.mrf.mxu0
    %v626 = vadd.f32 %v543, %v625
    %v627 = vpop.f32.mrf.mxu0
    %v628 = vadd.f32 %v543, %v627
    %629 = vmatmul.bf16.gmra.mxu0 %v559
    %v630 = vpop.f32.mrf.mxu0
    %v631 = vadd.f32 %v543, %v630
    %v632 = vpop.f32.mrf.mxu0
    %v633 = vadd.f32 %v543, %v632
    %634 = vdwg.mxu0
    %v635 = vmul.f32 %v621, %v621
    %v636 = vmul.f32 %v623, %v623
    %v637 = vmul.f32 %v626, %v626
    %v638 = vmul.f32 %v628, %v628
    %v639 = vmul.f32 %v631, %v631
    %v640 = vmul.f32 %v633, %v633
    %641 = vadd.xlane.f32.xlu0 %v635
    %v642 = vpop.xlane.xlu0 %641
    %643 = vadd.xlane.f32.xlu0 %v636
    %v644 = vpop.xlane.xlu0 %643
    %645 = vadd.xlane.f32.xlu0 %v637
    %v646 = vpop.xlane.xlu0 %645
    %647 = vadd.xlane.f32.xlu0 %v638
    %v648 = vpop.xlane.xlu0 %647
    %649 = vadd.xlane.f32.xlu0 %v639
    %v650 = vpop.xlane.xlu0 %649
    %651 = vadd.xlane.f32.xlu0 %v640
    %v652 = vpop.xlane.xlu0 %651
    %v653 = vadd.f32 %v642, 1e-12
    %v654 = vadd.f32 %v644, 1e-12
    %v655 = vadd.f32 %v646, 1e-12
    %v656 = vadd.f32 %v648, 1e-12
    %v657 = vadd.f32 %v650, 1e-12
    %v658 = vadd.f32 %v652, 1e-12
    %v659 = vrsqrt.pop %v653
    %v660 = vmul.f32 %v659, %v653
    %v661 = vmul.f32 %v660, %v659
    %v662 = vmul.f32 0.5, %v661
    %v663 = vsub.f32 1.5, %v662
    %v664 = vmul.f32 %v659, %v663
    %vm665 = vweird.f32 %v653
    %vm666 = vweird.f32 %v659
    %vm667 = vmor %vm665, %vm666
    %v668 = vsel %vm667, %v659, %v664
    %v669 = vrsqrt.pop %v654
    %v670 = vmul.f32 %v669, %v654
    %v671 = vmul.f32 %v670, %v669
    %v672 = vmul.f32 0.5, %v671
    %v673 = vsub.f32 1.5, %v672
    %v674 = vmul.f32 %v669, %v673
    %vm675 = vweird.f32 %v654
    %vm676 = vweird.f32 %v669
    %vm677 = vmor %vm675, %vm676
    %v678 = vsel %vm677, %v669, %v674
    %v679 = vrsqrt.pop %v655
    %v680 = vmul.f32 %v679, %v655
    %v681 = vmul.f32 %v680, %v679
    %v682 = vmul.f32 0.5, %v681
    %v683 = vsub.f32 1.5, %v682
    %v684 = vmul.f32 %v679, %v683
    %vm685 = vweird.f32 %v655
    %vm686 = vweird.f32 %v679
    %vm687 = vmor %vm685, %vm686
    %v688 = vsel %vm687, %v679, %v684
    %v689 = vrsqrt.pop %v656
    %v690 = vmul.f32 %v689, %v656
    %v691 = vmul.f32 %v690, %v689
    %v692 = vmul.f32 0.5, %v691
    %v693 = vsub.f32 1.5, %v692
    %v694 = vmul.f32 %v689, %v693
    %vm695 = vweird.f32 %v656
    %vm696 = vweird.f32 %v689
    %vm697 = vmor %vm695, %vm696
    %v698 = vsel %vm697, %v689, %v694
    %v699 = vrsqrt.pop %v657
    %v700 = vmul.f32 %v699, %v657
    %v701 = vmul.f32 %v700, %v699
    %v702 = vmul.f32 0.5, %v701
    %v703 = vsub.f32 1.5, %v702
    %v704 = vmul.f32 %v699, %v703
    %vm705 = vweird.f32 %v657
    %vm706 = vweird.f32 %v699
    %vm707 = vmor %vm705, %vm706
    %v708 = vsel %vm707, %v699, %v704
    %v709 = vrsqrt.pop %v658
    %v710 = vmul.f32 %v709, %v658
    %v711 = vmul.f32 %v710, %v709
    %v712 = vmul.f32 0.5, %v711
    %v713 = vsub.f32 1.5, %v712
    %v714 = vmul.f32 %v709, %v713
    %vm715 = vweird.f32 %v658
    %vm716 = vweird.f32 %v709
    %vm717 = vmor %vm715, %vm716
    %v718 = vsel %vm717, %v709, %v714
    %v719 = vmul.f32 %v621, %v668
    %v720 = vmul.f32 %v623, %v678
    %v721 = vmul.f32 %v626, %v688
    %v722 = vmul.f32 %v628, %v698
    %v723 = vmul.f32 %v631, %v708
    %v724 = vmul.f32 %v633, %v718
    %v725 = vpack.c.bf16 %v720, %v719
    %v726 = vpack.c.bf16 %v722, %v721
    %v727 = vpack.c.bf16 %v724, %v723
    %728 = vmatpush.bf16.xpose.msra.mxu0 %v518
    %729 = vmatpush.bf16.xpose.msra.mxu0 %v517
    %730 = vmatpush.bf16.xpose.msra.mxu0 %v516
    %731 = vmatpush.bf16.xpose.msra.mxu0 %v515
    %732 = vmatpush.bf16.xpose.msra.mxu0 %v514
    %733 = vmatpush.bf16.xpose.msra.mxu0 %v513
    %734 = vmatpush.bf16.xpose.msra.mxu0 %v512
    %735 = vmatpush.bf16.xpose.msra.mxu0 %v511
    %736 = vmatmul.bf16.gmra.mxu0 %v725
    %v737 = vpop.f32.mrf.mxu0
    %v738 = vadd.f32 0.0, %v737
    %v739 = vpop.f32.mrf.mxu0
    %v740 = vadd.f32 0.0, %v739
    %741 = vmatmul.bf16.gmra.mxu0 %v726
    %v742 = vpop.f32.mrf.mxu0
    %v743 = vadd.f32 0.0, %v742
    %v744 = vpop.f32.mrf.mxu0
    %v745 = vadd.f32 0.0, %v744
    %746 = vmatmul.bf16.gmra.mxu0 %v727
    %v747 = vpop.f32.mrf.mxu0
    %v748 = vadd.f32 0.0, %v747
    %v749 = vpop.f32.mrf.mxu0
    %v750 = vadd.f32 0.0, %v749
    %751 = vdwg.mxu0
    %v752 = vmul.f32 %v738, 14.285714
    %v753 = vmul.f32 %v740, 14.285714
    %v754 = vmul.f32 %v743, 14.285714
    %v755 = vmul.f32 %v745, 14.285714
    %v756 = vmul.f32 %v748, 14.285714
    %v757 = vmul.f32 %v750, 14.285714
    %v758 = vlaneseq
    %v759 = vshrl.u32 %v758, 7
    %v760 = vadd.s32 %v759, 8
    %v761 = vadd.s32 %v759, 16
    %v762 = vadd.s32 %v759, 24
    %v763 = vadd.s32 %v759, 32
    %v764 = vadd.s32 %v759, 40
    %v765 = vmax.f32 %v752, %v756
    %v766 = vmax.f32 %v753, %v757
    %v767 = vmax.f32 %v765, %v766
    %v768 = vmax.f32 %v754, %v755
    %v769 = vmax.f32 %v767, %v768
    %v770 = vrot.slane %v769, 4
    %v771 = vmax.f32 %v769, %v770
    %v772 = vrot.slane %v771, 2
    %v773 = vmax.f32 %v771, %v772
    %v774 = vrot.slane %v773, 1
    %v775 = vmax.f32 %v773, %v774
    %v776 = vsub.f32 %v752, %v775
    %v777 = vsub.f32 %v753, %v775
    %v778 = vsub.f32 %v754, %v775
    %v779 = vsub.f32 %v755, %v775
    %v780 = vsub.f32 %v756, %v775
    %v781 = vsub.f32 %v757, %v775
    %v782 = vmul.f32 %v776, 1.442695
    %v783 = vpow.pop %v782
    %v784 = vmul.f32 %v777, 1.442695
    %v785 = vpow.pop %v784
    %v786 = vmul.f32 %v778, 1.442695
    %v787 = vpow.pop %v786
    %v788 = vmul.f32 %v779, 1.442695
    %v789 = vpow.pop %v788
    %v790 = vmul.f32 %v780, 1.442695
    %v791 = vpow.pop %v790
    %v792 = vmul.f32 %v781, 1.442695
    %v793 = vpow.pop %v792
    %v794 = vadd.f32 %v783, %v785
    %v795 = vadd.f32 %v794, %v787
    %v796 = vadd.f32 %v795, %v789
    %v797 = vadd.f32 %v796, %v791
    %v798 = vadd.f32 %v797, %v793
    %v799 = vrot.slane %v798, 4
    %v800 = vadd.f32 %v798, %v799
    %v801 = vrot.slane %v800, 2
    %v802 = vadd.f32 %v800, %v801
    %v803 = vrot.slane %v802, 1
    %v804 = vadd.f32 %v802, %v803
    %v805 = vlog2.pop %v804
    %v806 = vmul.f32 %v805, 0.6931472
    %v807 = vadd.f32 %v775, %v806
    %v808 = vld [vmem:[%s6] sm:$0x1]
    %v809 = vperm.slane %v808, 0
    %vm810 = vcmp.eq.s32.totalorder %v759, %v809
    %vm811 = vcmp.eq.s32.totalorder %v760, %v809
    %vm812 = vcmp.eq.s32.totalorder %v761, %v809
    %vm813 = vcmp.eq.s32.totalorder %v762, %v809
    %vm814 = vcmp.eq.s32.totalorder %v763, %v809
    %vm815 = vcmp.eq.s32.totalorder %v764, %v809
    %v816 = vsel %vm810, %v752, 0.0
    %v817 = vsel %vm811, %v753, 0.0
    %v818 = vsel %vm812, %v754, 0.0
    %v819 = vsel %vm813, %v755, 0.0
    %v820 = vsel %vm814, %v756, 0.0
    %v821 = vsel %vm815, %v757, 0.0
    %v822 = vadd.f32 %v816, %v817
    %v823 = vadd.f32 %v822, %v818
    %v824 = vadd.f32 %v823, %v819
    %v825 = vadd.f32 %v824, %v820
    %v826 = vadd.f32 %v825, %v821
    %v827 = vrot.slane %v826, 4
    %v828 = vadd.f32 %v826, %v827
    %v829 = vrot.slane %v828, 2
    %v830 = vadd.f32 %v828, %v829
    %v831 = vrot.slane %v830, 1
    %v832 = vadd.f32 %v830, %v831
    %v833 = vsub.f32 %v807, %v832
    %s834 = smul.u32 0, 128
    %v835 = vlaneseq
    %v836 = vand.u32 %v835, 127
    %v837 = vstv %s834
    %v838 = vadd.s32 %v837, %v836
    %vm839 = vcmp.lt.s32.totalorder %v838, 40
    %v840 = vsel %vm839, %v833, 0.0
    %841 = vst [vmem:[#allocation10] sm:$0x1] %v840
    // Predicated region
    $region46: #{tpu_custom_call.1} parent=1 // pred_check
      _
    $region47: #{tpu_custom_call.1} parent=1 // pred_check_branch
      %843 = sbr.rel (0) target = $region49
    $region48: #{tpu_custom_call.1} parent=1 // pred_region
      %845 = vsyncadd [#allocation4], 0
      %s847 = sshll.u32 [#allocation10], 4
      %s848 = int_to_ptr.vmem [resolvable:$true] %s847
      %s849 = sshll.u32 %s7, 4
      %s850 = int_to_ptr.hbm [resolvable:$true] %s849
      %852 = dma.vmem_to_hbm [thread:$0]  %s848, 16, %s850, [#allocation4]
    $region49: #{tpu_custom_call.1} parent=1 // pred_fallthru
      _
    // Predicated region
    $region50: #{tpu_custom_call.1} parent=1 // pred_check
      _
    $region51: #{tpu_custom_call.1} parent=1 // pred_check_branch
      %854 = sbr.rel (0) target = $region53
    $region52: #{tpu_custom_call.1} parent=1 // pred_region
      %856 = dma.done [#allocation4], 16
    $region53: #{tpu_custom_call.1} parent=1 // pred_fallthru
      _
    %857 = vsyncpa [#allocation3], 1
    %858 = vsyncpa [#allocation6], 1
    %859 = vsyncpa [#allocation9], 1
    %860 = vsyncpa [#allocation4], 1

</llo_original>
